<compile_context>
chip_gen: v6e
topology: v6e:2x2x1
jax: 0.10.0
libtpu: 0.0.40
codegen_flags: <defaults>
</compile_context>

<pallas_src>
import functools

import jax
import jax.numpy as jnp
from jax.experimental import pallas as pl
from jax.experimental.pallas import tpu as pltpu


# ----------------------------------------------------------------------------
# helpers
# ----------------------------------------------------------------------------
def _rup(n, m):
    return -(-n // m) * m


def _pad_mat(w, rows, cols):
    out = jnp.zeros((rows, cols), jnp.float32)
    return out.at[: w.shape[0], : w.shape[1]].set(w.astype(jnp.float32))


def _pack_bias(b, cols):
    """Pack a bias vector into row 0 of an (8, cols) sublane/lane-aligned tile."""
    b = jnp.asarray(b, jnp.float32).reshape(-1)
    out = jnp.zeros((8, cols), jnp.float32)
    return out.at[0, : b.shape[0]].set(b)


def _bn_fold(g, beta, mean, var, eps):
    g = jnp.asarray(g, jnp.float32).reshape(1, -1)
    beta = jnp.asarray(beta, jnp.float32).reshape(1, -1)
    mean = jnp.asarray(mean, jnp.float32).reshape(1, -1)
    var = jnp.asarray(var, jnp.float32).reshape(1, -1)
    scale = g * jax.lax.rsqrt(var + eps)
    shift = beta - mean * scale
    return scale, shift


# ----------------------------------------------------------------------------
# One-time host-side prep: BN fold into NEXT layer's weights + 128/8 padding.
# Runs ONCE at init (hoisted out of the jitted forward).
# ----------------------------------------------------------------------------
def prepare_fused_params(params, num_rnk, eps=1e-5):
    eval_layers = params["eval_layers"]
    rnk_layers = params["rnk_layers"]
    w_fin, b_fin = params["rnk_final"]

    flat = []

    # ---- eval MLP: each layer's BN folds into the NEXT layer's weights ----
    d_in = eval_layers[0][0].shape[0]
    d_eval_pad = _rup(d_in, 128)
    in_pad = d_eval_pad
    prev_scale = prev_shift = None
    max_w_pad = 128
    for (w, b, g, beta, mean, var) in eval_layers:
        w = jnp.asarray(w, jnp.float32)
        b = jnp.asarray(b, jnp.float32).reshape(1, -1)
        if prev_scale is not None:
            b = b + prev_shift @ w
            w = prev_scale.T * w                      # diag(scale) @ W
        dout_pad = _rup(w.shape[1], 128)
        max_w_pad = max(max_w_pad, dout_pad)
        flat.append(_pad_mat(w, in_pad, dout_pad))
        flat.append(_pack_bias(b, dout_pad))
        prev_scale, prev_shift = _bn_fold(g, beta, mean, var, eps)
        in_pad = dout_pad
    eval_out = eval_layers[-1][0].shape[1]
    eval_out_pad = in_pad
    eval_scale, eval_shift = prev_scale, prev_shift   # folds into ranker rank-blocks

    # ---- ranker first stage: split into req block + per-rank blocks ----
    n_rnk_hidden = len(rnk_layers)
    if n_rnk_hidden > 0:
        w1, b1, g1, bt1, m1, v1 = rnk_layers[0]
        scale1, shift1 = _bn_fold(g1, bt1, m1, v1, eps)
    else:
        w1, b1 = w_fin, b_fin                          # first stage IS the final Linear
        scale1 = shift1 = None
    w1 = jnp.asarray(w1, jnp.float32)
    b1 = jnp.asarray(b1, jnp.float32).reshape(1, -1)
    h1_pad = _rup(w1.shape[1], 128)
    max_w_pad = max(max_w_pad, h1_pad)
    key_size = w1.shape[0] - num_rnk * eval_out
    key_pad = _rup(key_size, 128)

    flat.append(_pad_mat(w1[num_rnk * eval_out:, :], key_pad, h1_pad))        # req block
    for r in range(num_rnk):                                                  # rank blocks
        w_r = w1[r * eval_out:(r + 1) * eval_out, :]
        b1 = b1 + eval_shift @ w_r                     # fold last eval BN shift
        flat.append(_pad_mat(eval_scale.T * w_r, eval_out_pad, h1_pad))       # fold eval BN scale
    flat.append(_pack_bias(b1, h1_pad))
    in_pad = h1_pad
    prev_scale, prev_shift = scale1, shift1

    # ---- remaining ranker hidden layers ----
    for (w, b, g, bt, m, v) in rnk_layers[1:]:
        w = jnp.asarray(w, jnp.float32)
        b = jnp.asarray(b, jnp.float32).reshape(1, -1)
        b = b + prev_shift @ w
        w = prev_scale.T * w
        dout_pad = _rup(w.shape[1], 128)
        max_w_pad = max(max_w_pad, dout_pad)
        flat.append(_pad_mat(w, in_pad, dout_pad))
        flat.append(_pack_bias(b, dout_pad))
        prev_scale, prev_shift = _bn_fold(g, bt, m, v, eps)
        in_pad = dout_pad

    # ---- final Linear ----
    if n_rnk_hidden > 0:
        w = jnp.asarray(w_fin, jnp.float32)
        b = jnp.asarray(b_fin, jnp.float32).reshape(1, -1)
        b = b + prev_shift @ w
        w = prev_scale.T * w
        out_pad = _rup(w.shape[1], 128)
        flat.append(_pad_mat(w, in_pad, out_pad))
        flat.append(_pack_bias(b, out_pad))
    else:
        out_pad = h1_pad

    meta = dict(num_rnk=num_rnk, n_eval=len(eval_layers), n_rnk_hidden=n_rnk_hidden,
                d_eval_pad=d_eval_pad, key_pad=key_pad, out_pad=out_pad,
                max_w_pad=max_w_pad)
    return flat, meta


# ----------------------------------------------------------------------------
# Fused Pallas kernel: whole PolicyNet MLP path for one batch tile
# ----------------------------------------------------------------------------
def make_fused_kernel(n_eval, n_rnk_hidden, num_rnk, tb):
    def kernel(eval_in_ref, req_ref, *refs):
        out_ref = refs[-1]
        it = iter(refs[:-1])

        # --- eval MLP: ranks stacked into the batch dim -> ONE matmul per layer ---
        x = eval_in_ref[...]
        x = x.reshape(num_rnk * tb, x.shape[-1])       # tb % 8 == 0: tile-aligned merge
        for _ in range(n_eval):
            w = next(it)[...]
            b = next(it)[0:1, :]
            x = jnp.maximum(jnp.dot(x, w, preferred_element_type=jnp.float32) + b, 0.0)
            # BN folded into next layer's weights; Dropout is identity in eval mode.

        # --- ranker stage 1: split matmul == concat(evl_0..evl_{R-1}, req) @ W1 ---
        w_req = next(it)[...]
        acc = jnp.dot(req_ref[...], w_req, preferred_element_type=jnp.float32)
        for r in range(num_rnk):                       # single accumulator chain
            w_r = next(it)[...]
            acc = acc + jnp.dot(x[r * tb:(r + 1) * tb, :], w_r,
                                preferred_element_type=jnp.float32)
        b1 = next(it)[0:1, :]

        if n_rnk_hidden == 0:
            out_ref[...] = acc + b1                    # first stage IS the final Linear
            return
        y = jnp.maximum(acc + b1, 0.0)

        # --- remaining ranker hidden layers ---
        for _ in range(n_rnk_hidden - 1):
            w = next(it)[...]
            b = next(it)[0:1, :]
            y = jnp.maximum(jnp.dot(y, w, preferred_element_type=jnp.float32) + b, 0.0)

        # --- final Linear (lane-dense, 128-padded output) ---
        w = next(it)[...]
        b = next(it)[0:1, :]
        out_ref[...] = jnp.dot(y, w, preferred_element_type=jnp.float32) + b

    return kernel


# ----------------------------------------------------------------------------
# Parameter initialization (deterministic, mirrors PolicyNet.__init__ shapes)
# ----------------------------------------------------------------------------
def init_params(key, embed_size, key_size, coordi_size, item_sizes,
                num_hid_eval, num_hid_rnk, num_rnk):
    keys = iter(jax.random.split(key, 64))
    p = {}
    names = ["outer", "top", "bottom", "shoes"]
    for name, vocab in zip(names, item_sizes):
        p[f"{name}_embed"] = jax.random.normal(next(keys), (vocab, embed_size),
                                               dtype=jnp.float32)
        p[f"{name}_bias"] = 0.01 * jax.random.normal(next(keys), (1, embed_size),
                                                     dtype=jnp.float32)

    def linear(k, din, dout):
        kw, kb = jax.random.split(k)
        lim = 1.0 / (din ** 0.5)
        w = jax.random.uniform(kw, (din, dout), jnp.float32, -lim, lim)
        b = jax.random.uniform(kb, (1, dout), jnp.float32, -lim, lim)
        return w, b

    def bn(dout):
        # gamma, beta, running_mean, running_var (PyTorch defaults)
        return (jnp.ones((1, dout), jnp.float32),
                jnp.zeros((1, dout), jnp.float32),
                jnp.zeros((1, dout), jnp.float32),
                jnp.ones((1, dout), jnp.float32))

    eval_layers = []
    din = embed_size * coordi_size + key_size
    for dout in num_hid_eval:
        w, b = linear(next(keys), din, dout)
        eval_layers.append((w, b) + bn(dout))
        din = dout
    p["eval_layers"] = eval_layers
    eval_out = din

    rnk_layers = []
    din = eval_out * num_rnk + key_size
    for dout in num_hid_rnk:
        w, b = linear(next(keys), din, dout)
        rnk_layers.append((w, b) + bn(dout))
        din = dout
    p["rnk_layers"] = rnk_layers
    p["rnk_final"] = linear(next(keys), din, num_rnk)
    return p


# ----------------------------------------------------------------------------
# Forward pass: JAX glue (embedding gather/concat/pad) + single fused Pallas kernel.
# All padded parameters are precomputed once and passed in via `flat`.
# ----------------------------------------------------------------------------
def policy_net_forward(embed_params, flat, req, crd, *, num_rnk, n_eval, n_rnk_hidden,
                       d_eval_pad, key_pad, out_pad, max_w_pad):
    # req: (B, key_size) f32 ; crd: (B, num_rnk, 4) int32
    B, key_size = req.shape
    names = ["outer", "top", "bottom", "shoes"]
    embeds = [jnp.take(embed_params[f"{n}_embed"], crd[:, :, j], axis=0)
              + embed_params[f"{n}_bias"] for j, n in enumerate(names)]
    crd_embed = jnp.concatenate(embeds, axis=-1)               # (B, num_rnk, 4E)
    crd_embed_tr = jnp.transpose(crd_embed, (1, 0, 2))         # (num_rnk, B, 4E)
    req_b = jnp.broadcast_to(req[None], (num_rnk, B, key_size))
    eval_in = jnp.concatenate([crd_embed_tr, req_b], axis=-1)  # (num_rnk, B, 4E+K)
    d_eval = eval_in.shape[-1]

    # --- batch tiling: large tiles, but >=2 grid steps when B>8 (v7x megacore) ---
    B8 = _rup(B, 8)
    row_bytes = 4 * (2 * num_rnk * d_eval_pad + 2 * key_pad + 2 * out_pad
                     + 3 * num_rnk * max_w_pad)   # dbl-buffered IO + live activations
    tb_cap = max(8, min(1024, ((20 * 1024 * 1024) // row_bytes) // 8 * 8))
    TB = B8 if B8 <= 8 else min(tb_cap, _rup((B8 + 1) // 2, 8))
    B_pad = _rup(B8, TB)

    eval_in_p = jnp.zeros((num_rnk, B_pad, d_eval_pad), jnp.float32)
    eval_in_p = eval_in_p.at[:, :B, :d_eval].set(eval_in)
    req_p = jnp.zeros((B_pad, key_pad), jnp.float32).at[:B, :key_size].set(req)

    kernel = make_fused_kernel(n_eval, n_rnk_hidden, num_rnk, TB)
    out = pl.pallas_call(
        kernel,
        grid=(B_pad // TB,),
        in_specs=[pl.BlockSpec((num_rnk, TB, d_eval_pad), lambda i: (0, i, 0)),
                  pl.BlockSpec((TB, key_pad), lambda i: (i, 0))]
                 + [pl.BlockSpec(p.shape, lambda i: (0, 0)) for p in flat],
        out_specs=pl.BlockSpec((TB, out_pad), lambda i: (i, 0)),
        out_shape=jax.ShapeDtypeStruct((B_pad, out_pad), jnp.float32),
        compiler_params=pltpu.CompilerParams(
            dimension_semantics=("parallel",),          # row tiles split across TCs on v7x
            vmem_limit_bytes=32 * 1024 * 1024),         # safe on v5e/v6e/v7x
    )(eval_in_p, req_p, *flat)

    return out[:B, :num_rnk]                            # slice away row/lane padding


# ----------------------------------------------------------------------------
# Pure-JAX reference for validation (standard un-fused BN, running stats).
# ----------------------------------------------------------------------------
def _mlp_ref(x, bn_layers, final=None):
    hp = jax.lax.Precision.HIGHEST
    for (w, b, g, bt, m, v) in bn_layers:
        x = jnp.maximum(jnp.dot(x, w, precision=hp) + b, 0.0)
        x = (x - m) * jax.lax.rsqrt(v + 1e-5) * g + bt
    if final is not None:
        w, b = final
        x = jnp.dot(x, w, precision=hp) + b
    return x


def policy_net_reference(params, req, crd, num_rnk):
    names = ["outer", "top", "bottom", "shoes"]
    embeds = [jnp.take(params[f"{n}_embed"], crd[:, :, j], axis=0) + params[f"{n}_bias"]
              for j, n in enumerate(names)]
    crd_embed_tr = jnp.transpose(jnp.concatenate(embeds, axis=-1), (1, 0, 2))
    evals = [_mlp_ref(jnp.concatenate([crd_embed_tr[i], req], axis=1),
                      params["eval_layers"]) for i in range(num_rnk)]
    in_rnk = jnp.concatenate(evals + [req], axis=1)
    return _mlp_ref(in_rnk, params["rnk_layers"], params["rnk_final"])


if __name__ == "__main__":
    # Small deterministic config consistent with PolicyNet.__init__
    embed_size = 16
    key_size = 32
    coordi_size = 4
    item_sizes = [8, 10, 12, 14]
    dropout_prob = 0.1           # identity in eval mode
    eval_node = "[64,32][32,16]"
    num_rnk = 3
    batch = 2

    buf = eval_node[1:-1].split("][")
    num_hid_eval = list(map(int, buf[0].split(",")))
    num_hid_rnk = list(map(int, buf[1].split(",")))

    root = jax.random.PRNGKey(0)
    kp, kreq, kcrd = jax.random.split(root, 3)
    params = init_params(kp, embed_size, key_size, coordi_size, item_sizes,
                         num_hid_eval, num_hid_rnk, num_rnk)

    req = jax.random.normal(kreq, (batch, key_size), dtype=jnp.float32)
    crd_cols = []
    for j, vocab in enumerate(item_sizes):
        kcrd, kc = jax.random.split(kcrd)
        crd_cols.append(jax.random.randint(kc, (batch, num_rnk, 1), 0, vocab,
                                           dtype=jnp.int32))
    crd = jnp.concatenate(crd_cols, axis=-1)                   # (B, num_rnk, 4)

    # One-time host-side prep (BN fold + padding), hoisted out of the jitted forward.
    flat, meta = prepare_fused_params(params, num_rnk)
    embed_params = {k: params[k] for k in
                    ["outer_embed", "outer_bias", "top_embed", "top_bias",
                     "bottom_embed", "bottom_bias", "shoes_embed", "shoes_bias"]}

    fwd = jax.jit(functools.partial(policy_net_forward, **meta))
    out = jax.block_until_ready(fwd(embed_params, flat, req, crd))
    assert out.shape == (batch, num_rnk) and out.dtype == jnp.float32

    ref = jax.block_until_ready(policy_net_reference(params, req, crd, num_rnk))
    assert jnp.allclose(out, ref, rtol=1e-4, atol=1e-4), (out, ref)

    print("KERNEL_OK")
</pallas_src>

<mosaic_0001>
module attributes {stable_mosaic.version = 11 : i64} {
  func.func @kernel(%arg0: i32, %arg1: memref<3x8x128xf32, #tpu.memory_space<vmem>>, %arg2: memref<8x128xf32, #tpu.memory_space<vmem>>, %arg3: memref<128x128xf32, #tpu.memory_space<vmem>>, %arg4: memref<8x128xf32, #tpu.memory_space<vmem>>, %arg5: memref<128x128xf32, #tpu.memory_space<vmem>>, %arg6: memref<8x128xf32, #tpu.memory_space<vmem>>, %arg7: memref<128x128xf32, #tpu.memory_space<vmem>>, %arg8: memref<128x128xf32, #tpu.memory_space<vmem>>, %arg9: memref<128x128xf32, #tpu.memory_space<vmem>>, %arg10: memref<128x128xf32, #tpu.memory_space<vmem>>, %arg11: memref<8x128xf32, #tpu.memory_space<vmem>>, %arg12: memref<128x128xf32, #tpu.memory_space<vmem>>, %arg13: memref<8x128xf32, #tpu.memory_space<vmem>>, %arg14: memref<128x128xf32, #tpu.memory_space<vmem>>, %arg15: memref<8x128xf32, #tpu.memory_space<vmem>>, %arg16: memref<8x128xf32, #tpu.memory_space<vmem>>) attributes {dimension_semantics = [#tpu.dimension_semantics<parallel>], iteration_bounds = array<i64: 1>, scalar_prefetch = 0 : i64, scratch_operands = 0 : i64, tpu.core_type = #tpu.core_type<tc>, window_params = [{transform_indices = @transform_0, window_bounds = array<i64: 3, 8, 128>}, {transform_indices = @transform_1, window_bounds = array<i64: 8, 128>}, {pipeline_mode = #tpu.pipeline_mode<synchronous>, transform_indices = @transform_2, window_bounds = array<i64: 128, 128>}, {pipeline_mode = #tpu.pipeline_mode<synchronous>, transform_indices = @transform_3, window_bounds = array<i64: 8, 128>}, {pipeline_mode = #tpu.pipeline_mode<synchronous>, transform_indices = @transform_4, window_bounds = array<i64: 128, 128>}, {pipeline_mode = #tpu.pipeline_mode<synchronous>, transform_indices = @transform_5, window_bounds = array<i64: 8, 128>}, {pipeline_mode = #tpu.pipeline_mode<synchronous>, transform_indices = @transform_6, window_bounds = array<i64: 128, 128>}, {pipeline_mode = #tpu.pipeline_mode<synchronous>, transform_indices = @transform_7, window_bounds = array<i64: 128, 128>}, {pipeline_mode = #tpu.pipeline_mode<synchronous>, transform_indices = @transform_8, window_bounds = array<i64: 128, 128>}, {pipeline_mode = #tpu.pipeline_mode<synchronous>, transform_indices = @transform_9, window_bounds = array<i64: 128, 128>}, {pipeline_mode = #tpu.pipeline_mode<synchronous>, transform_indices = @transform_10, window_bounds = array<i64: 8, 128>}, {pipeline_mode = #tpu.pipeline_mode<synchronous>, transform_indices = @transform_11, window_bounds = array<i64: 128, 128>}, {pipeline_mode = #tpu.pipeline_mode<synchronous>, transform_indices = @transform_12, window_bounds = array<i64: 8, 128>}, {pipeline_mode = #tpu.pipeline_mode<synchronous>, transform_indices = @transform_13, window_bounds = array<i64: 128, 128>}, {pipeline_mode = #tpu.pipeline_mode<synchronous>, transform_indices = @transform_14, window_bounds = array<i64: 8, 128>}, {transform_indices = @transform_15, window_bounds = array<i64: 8, 128>}]} {
    %c0 = arith.constant 0 : index
    %c0_0 = arith.constant 0 : index
    %c0_1 = arith.constant 0 : index
    %0 = vector.load %arg1[%c0, %c0_0, %c0_1] : memref<3x8x128xf32, #tpu.memory_space<vmem>>, vector<3x8x128xf32>
    %1 = vector.shape_cast %0 : vector<3x8x128xf32> to vector<24x128xf32>
    %c0_2 = arith.constant 0 : index
    %c0_3 = arith.constant 0 : index
    %2 = vector.load %arg3[%c0_2, %c0_3] : memref<128x128xf32, #tpu.memory_space<vmem>>, vector<128x128xf32>
    %c0_4 = arith.constant 0 : index
    %c0_5 = arith.constant 0 : index
    %3 = vector.load %arg4[%c0_4, %c0_5] : memref<8x128xf32, #tpu.memory_space<vmem>>, vector<1x128xf32>
    %cst = arith.constant dense<0.000000e+00> : vector<24x128xf32>
    %4 = tpu.matmul %1, %2, %cst {dimension_numbers = #tpu.dot_dimension_numbers<[1], [0], [0], [1], [0, 0, 1, 1], [], []>} : vector<24x128xf32>, vector<128x128xf32>, vector<24x128xf32> -> vector<24x128xf32>
    %5 = vector.broadcast %3 : vector<1x128xf32> to vector<24x128xf32>
    %6 = arith.addf %4, %5 : vector<24x128xf32>
    %cst_6 = arith.constant 0.000000e+00 : f32
    %7 = vector.broadcast %cst_6 : f32 to vector<24x128xf32>
    %8 = arith.maximumf %6, %7 : vector<24x128xf32>
    %c0_7 = arith.constant 0 : index
    %c0_8 = arith.constant 0 : index
    %9 = vector.load %arg5[%c0_7, %c0_8] : memref<128x128xf32, #tpu.memory_space<vmem>>, vector<128x128xf32>
    %c0_9 = arith.constant 0 : index
    %c0_10 = arith.constant 0 : index
    %10 = vector.load %arg6[%c0_9, %c0_10] : memref<8x128xf32, #tpu.memory_space<vmem>>, vector<1x128xf32>
    %cst_11 = arith.constant dense<0.000000e+00> : vector<24x128xf32>
    %11 = tpu.matmul %8, %9, %cst_11 {dimension_numbers = #tpu.dot_dimension_numbers<[1], [0], [0], [1], [0, 0, 1, 1], [], []>} : vector<24x128xf32>, vector<128x128xf32>, vector<24x128xf32> -> vector<24x128xf32>
    %12 = vector.broadcast %10 : vector<1x128xf32> to vector<24x128xf32>
    %13 = arith.addf %11, %12 : vector<24x128xf32>
    %cst_12 = arith.constant 0.000000e+00 : f32
    %14 = vector.broadcast %cst_12 : f32 to vector<24x128xf32>
    %15 = arith.maximumf %13, %14 : vector<24x128xf32>
    %c0_13 = arith.constant 0 : index
    %c0_14 = arith.constant 0 : index
    %16 = vector.load %arg7[%c0_13, %c0_14] : memref<128x128xf32, #tpu.memory_space<vmem>>, vector<128x128xf32>
    %c0_15 = arith.constant 0 : index
    %c0_16 = arith.constant 0 : index
    %17 = vector.load %arg2[%c0_15, %c0_16] : memref<8x128xf32, #tpu.memory_space<vmem>>, vector<8x128xf32>
    %cst_17 = arith.constant dense<0.000000e+00> : vector<8x128xf32>
    %18 = tpu.matmul %17, %16, %cst_17 {dimension_numbers = #tpu.dot_dimension_numbers<[1], [0], [0], [1], [0, 0, 1, 1], [], []>} : vector<8x128xf32>, vector<128x128xf32>, vector<8x128xf32> -> vector<8x128xf32>
    %c0_18 = arith.constant 0 : index
    %c0_19 = arith.constant 0 : index
    %19 = vector.load %arg8[%c0_18, %c0_19] : memref<128x128xf32, #tpu.memory_space<vmem>>, vector<128x128xf32>
    %20 = vector.extract_strided_slice %15 {offsets = [0, 0], sizes = [8, 128], strides = [1, 1]} : vector<24x128xf32> to vector<8x128xf32>
    %cst_20 = arith.constant dense<0.000000e+00> : vector<8x128xf32>
    %21 = tpu.matmul %20, %19, %cst_20 {dimension_numbers = #tpu.dot_dimension_numbers<[1], [0], [0], [1], [0, 0, 1, 1], [], []>} : vector<8x128xf32>, vector<128x128xf32>, vector<8x128xf32> -> vector<8x128xf32>
    %22 = arith.addf %18, %21 : vector<8x128xf32>
    %c0_21 = arith.constant 0 : index
    %c0_22 = arith.constant 0 : index
    %23 = vector.load %arg9[%c0_21, %c0_22] : memref<128x128xf32, #tpu.memory_space<vmem>>, vector<128x128xf32>
    %24 = vector.extract_strided_slice %15 {offsets = [8, 0], sizes = [8, 128], strides = [1, 1]} : vector<24x128xf32> to vector<8x128xf32>
    %cst_23 = arith.constant dense<0.000000e+00> : vector<8x128xf32>
    %25 = tpu.matmul %24, %23, %cst_23 {dimension_numbers = #tpu.dot_dimension_numbers<[1], [0], [0], [1], [0, 0, 1, 1], [], []>} : vector<8x128xf32>, vector<128x128xf32>, vector<8x128xf32> -> vector<8x128xf32>
    %26 = arith.addf %22, %25 : vector<8x128xf32>
    %c0_24 = arith.constant 0 : index
    %c0_25 = arith.constant 0 : index
    %27 = vector.load %arg10[%c0_24, %c0_25] : memref<128x128xf32, #tpu.memory_space<vmem>>, vector<128x128xf32>
    %28 = vector.extract_strided_slice %15 {offsets = [16, 0], sizes = [8, 128], strides = [1, 1]} : vector<24x128xf32> to vector<8x128xf32>
    %cst_26 = arith.constant dense<0.000000e+00> : vector<8x128xf32>
    %29 = tpu.matmul %28, %27, %cst_26 {dimension_numbers = #tpu.dot_dimension_numbers<[1], [0], [0], [1], [0, 0, 1, 1], [], []>} : vector<8x128xf32>, vector<128x128xf32>, vector<8x128xf32> -> vector<8x128xf32>
    %30 = arith.addf %26, %29 : vector<8x128xf32>
    %c0_27 = arith.constant 0 : index
    %c0_28 = arith.constant 0 : index
    %31 = vector.load %arg11[%c0_27, %c0_28] : memref<8x128xf32, #tpu.memory_space<vmem>>, vector<1x128xf32>
    %32 = vector.broadcast %31 : vector<1x128xf32> to vector<8x128xf32>
    %33 = arith.addf %30, %32 : vector<8x128xf32>
    %cst_29 = arith.constant 0.000000e+00 : f32
    %34 = vector.broadcast %cst_29 : f32 to vector<8x128xf32>
    %35 = arith.maximumf %33, %34 : vector<8x128xf32>
    %c0_30 = arith.constant 0 : index
    %c0_31 = arith.constant 0 : index
    %36 = vector.load %arg12[%c0_30, %c0_31] : memref<128x128xf32, #tpu.memory_space<vmem>>, vector<128x128xf32>
    %c0_32 = arith.constant 0 : index
    %c0_33 = arith.constant 0 : index
    %37 = vector.load %arg13[%c0_32, %c0_33] : memref<8x128xf32, #tpu.memory_space<vmem>>, vector<1x128xf32>
    %cst_34 = arith.constant dense<0.000000e+00> : vector<8x128xf32>
    %38 = tpu.matmul %35, %36, %cst_34 {dimension_numbers = #tpu.dot_dimension_numbers<[1], [0], [0], [1], [0, 0, 1, 1], [], []>} : vector<8x128xf32>, vector<128x128xf32>, vector<8x128xf32> -> vector<8x128xf32>
    %39 = vector.broadcast %37 : vector<1x128xf32> to vector<8x128xf32>
    %40 = arith.addf %38, %39 : vector<8x128xf32>
    %cst_35 = arith.constant 0.000000e+00 : f32
    %41 = vector.broadcast %cst_35 : f32 to vector<8x128xf32>
    %42 = arith.maximumf %40, %41 : vector<8x128xf32>
    %c0_36 = arith.constant 0 : index
    %c0_37 = arith.constant 0 : index
    %43 = vector.load %arg14[%c0_36, %c0_37] : memref<128x128xf32, #tpu.memory_space<vmem>>, vector<128x128xf32>
    %c0_38 = arith.constant 0 : index
    %c0_39 = arith.constant 0 : index
    %44 = vector.load %arg15[%c0_38, %c0_39] : memref<8x128xf32, #tpu.memory_space<vmem>>, vector<1x128xf32>
    %cst_40 = arith.constant dense<0.000000e+00> : vector<8x128xf32>
    %45 = tpu.matmul %42, %43, %cst_40 {dimension_numbers = #tpu.dot_dimension_numbers<[1], [0], [0], [1], [0, 0, 1, 1], [], []>} : vector<8x128xf32>, vector<128x128xf32>, vector<8x128xf32> -> vector<8x128xf32>
    %46 = vector.broadcast %44 : vector<1x128xf32> to vector<8x128xf32>
    %47 = arith.addf %45, %46 : vector<8x128xf32>
    %c0_41 = arith.constant 0 : index
    %c0_42 = arith.constant 0 : index
    %48 = vector.load %arg16[%c0_41, %c0_42] : memref<8x128xf32, #tpu.memory_space<vmem>>, vector<8x128xf32>
    tpu.vector_store %arg16[%c0_41, %c0_42], %47 {strides = array<i32>} : memref<8x128xf32, #tpu.memory_space<vmem>>, vector<8x128xf32>,
    return
  }
  func.func @transform_0(%arg0: i32) -> (i32, i32, i32) {
    %c0_i32 = arith.constant 0 : i32
    %c0_i32_0 = arith.constant 0 : i32
    %c0_i32_1 = arith.constant 0 : i32
    return %c0_i32, %arg0, %c0_i32_0 : i32, i32, i32
  }
  func.func @transform_1(%arg0: i32) -> (i32, i32) {
    %c0_i32 = arith.constant 0 : i32
    %c0_i32_0 = arith.constant 0 : i32
    return %arg0, %c0_i32 : i32, i32
  }
  func.func @transform_2(%arg0: i32) -> (i32, i32) {
    %c0_i32 = arith.constant 0 : i32
    %c0_i32_0 = arith.constant 0 : i32
    %c0_i32_1 = arith.constant 0 : i32
    return %c0_i32, %c0_i32_0 : i32, i32
  }
  func.func @transform_3(%arg0: i32) -> (i32, i32) {
    %c0_i32 = arith.constant 0 : i32
    %c0_i32_0 = arith.constant 0 : i32
    %c0_i32_1 = arith.constant 0 : i32
    return %c0_i32, %c0_i32_0 : i32, i32
  }
  func.func @transform_4(%arg0: i32) -> (i32, i32) {
    %c0_i32 = arith.constant 0 : i32
    %c0_i32_0 = arith.constant 0 : i32
    %c0_i32_1 = arith.constant 0 : i32
    return %c0_i32, %c0_i32_0 : i32, i32
  }
  func.func @transform_5(%arg0: i32) -> (i32, i32) {
    %c0_i32 = arith.constant 0 : i32
    %c0_i32_0 = arith.constant 0 : i32
    %c0_i32_1 = arith.constant 0 : i32
    return %c0_i32, %c0_i32_0 : i32, i32
  }
  func.func @transform_6(%arg0: i32) -> (i32, i32) {
    %c0_i32 = arith.constant 0 : i32
    %c0_i32_0 = arith.constant 0 : i32
    %c0_i32_1 = arith.constant 0 : i32
    return %c0_i32, %c0_i32_0 : i32, i32
  }
  func.func @transform_7(%arg0: i32) -> (i32, i32) {
    %c0_i32 = arith.constant 0 : i32
    %c0_i32_0 = arith.constant 0 : i32
    %c0_i32_1 = arith.constant 0 : i32
    return %c0_i32, %c0_i32_0 : i32, i32
  }
  func.func @transform_8(%arg0: i32) -> (i32, i32) {
    %c0_i32 = arith.constant 0 : i32
    %c0_i32_0 = arith.constant 0 : i32
    %c0_i32_1 = arith.constant 0 : i32
    return %c0_i32, %c0_i32_0 : i32, i32
  }
  func.func @transform_9(%arg0: i32) -> (i32, i32) {
    %c0_i32 = arith.constant 0 : i32
    %c0_i32_0 = arith.constant 0 : i32
    %c0_i32_1 = arith.constant 0 : i32
    return %c0_i32, %c0_i32_0 : i32, i32
  }
  func.func @transform_10(%arg0: i32) -> (i32, i32) {
    %c0_i32 = arith.constant 0 : i32
    %c0_i32_0 = arith.constant 0 : i32
    %c0_i32_1 = arith.constant 0 : i32
    return %c0_i32, %c0_i32_0 : i32, i32
  }
  func.func @transform_11(%arg0: i32) -> (i32, i32) {
    %c0_i32 = arith.constant 0 : i32
    %c0_i32_0 = arith.constant 0 : i32
    %c0_i32_1 = arith.constant 0 : i32
    return %c0_i32, %c0_i32_0 : i32, i32
  }
  func.func @transform_12(%arg0: i32) -> (i32, i32) {
    %c0_i32 = arith.constant 0 : i32
    %c0_i32_0 = arith.constant 0 : i32
    %c0_i32_1 = arith.constant 0 : i32
    return %c0_i32, %c0_i32_0 : i32, i32
  }
  func.func @transform_13(%arg0: i32) -> (i32, i32) {
    %c0_i32 = arith.constant 0 : i32
    %c0_i32_0 = arith.constant 0 : i32
    %c0_i32_1 = arith.constant 0 : i32
    return %c0_i32, %c0_i32_0 : i32, i32
  }
  func.func @transform_14(%arg0: i32) -> (i32, i32) {
    %c0_i32 = arith.constant 0 : i32
    %c0_i32_0 = arith.constant 0 : i32
    %c0_i32_1 = arith.constant 0 : i32
    return %c0_i32, %c0_i32_0 : i32, i32
  }
  func.func @transform_15(%arg0: i32) -> (i32, i32) {
    %c0_i32 = arith.constant 0 : i32
    %c0_i32_0 = arith.constant 0 : i32
    return %arg0, %c0_i32 : i32, i32
  }
}

</mosaic_0001>

<llo_original>
// kernel: policy_net_forward.1
$region0: #{policy_net_forward.1}
  #allocation0 [shape = 'u32[]', space=smem, size = 0x4, offset = 0x4, fixed_abs, tag = 'smem constant byte address 0x4 - core index']
  #allocation1 [shape = 'u32[144,128]{1,0:T(1,128)}', space=vmem, size = 0x12000, scoped, tag = 'internal scratch']
  %s0 = inlined_call_operand.vmem [shape: f32[3,8,128], index: 0, kind: input, shape index: {}]
  %s1 = inlined_call_operand.vmem [shape: f32[8,128], index: 1, kind: input, shape index: {}]
  %s2 = inlined_call_operand.vmem [shape: f32[128,128], index: 2, kind: input, shape index: {}]
  %s3 = inlined_call_operand.vmem [shape: f32[8,128], index: 3, kind: input, shape index: {}]
  %s4 = inlined_call_operand.vmem [shape: f32[128,128], index: 4, kind: input, shape index: {}]
  %s5 = inlined_call_operand.vmem [shape: f32[8,128], index: 5, kind: input, shape index: {}]
  %s6 = inlined_call_operand.vmem [shape: f32[128,128], index: 6, kind: input, shape index: {}]
  %s7 = inlined_call_operand.hbm [shape: f32[128,128], index: 7, kind: input, shape index: {}]
  %s8 = inlined_call_operand.hbm [shape: f32[128,128], index: 8, kind: input, shape index: {}]
  %s9 = inlined_call_operand.hbm [shape: f32[128,128], index: 9, kind: input, shape index: {}]
  %s10 = inlined_call_operand.vmem [shape: f32[8,128], index: 10, kind: input, shape index: {}]
  %s11 = inlined_call_operand.hbm [shape: f32[128,128], index: 11, kind: input, shape index: {}]
  %s12 = inlined_call_operand.vmem [shape: f32[8,128], index: 12, kind: input, shape index: {}]
  %s13 = inlined_call_operand.hbm [shape: f32[128,128], index: 13, kind: input, shape index: {}]
  %s14 = inlined_call_operand.vmem [shape: f32[8,128], index: 14, kind: input, shape index: {}]
  %s15 = inlined_call_operand.vmem [shape: f32[8,128], index: 15, kind: output, shape index: {}]
  %s16 = sld [smem:[#allocation0]]
  $region90: #{policy_net_forward.1} parent=0
    _
  %s18 = ssub.s32 1, %s16
  %s19 = scalar_select 0, %s18, %s16
  $region1: #{policy_net_forward.1} parent=0
    #allocation2 [shape = 'u8[65536]{0}', space=vmem, size = 0x10000, scoped, tag = 'input window, operand 7, single buffered']
    #allocation3 [shape = 's32[1]{0}', space=sflag, size = 0x4, scoped, tag = 'scoped memory for policy_net_forward.1']
    #allocation4 [shape = 'u8[65536]{0}', space=vmem, size = 0x10000, scoped, tag = 'input window, operand 8, single buffered']
    #allocation5 [shape = 's32[1]{0}', space=sflag, size = 0x4, scoped, tag = 'scoped memory for policy_net_forward.1']
    #allocation6 [shape = 'u8[65536]{0}', space=vmem, size = 0x10000, scoped, tag = 'input window, operand 9, single buffered']
    #allocation7 [shape = 'u8[65536]{0}', space=vmem, size = 0x10000, scoped, tag = 'input window, operand 11, single buffered']
    #allocation8 [shape = 's32[1]{0}', space=sflag, size = 0x4, scoped, tag = 'scoped memory for policy_net_forward.1']
    #allocation9 [shape = 'u8[65536]{0}', space=vmem, size = 0x10000, scoped, tag = 'input window, operand 13, single buffered']
    %20 = vsyncpa [#allocation3], 0
    %21 = vsyncpa [#allocation5], 0
    %22 = vsyncpa [#allocation8], 0
    // Predicated region
    $region2: #{policy_net_forward.1} parent=1 // pred_check
      _
    $region3: #{policy_net_forward.1} parent=1 // pred_check_branch
      %24 = sbr.rel (0) target = $region5
    $region4: #{policy_net_forward.1} parent=1 // pred_region
      _
    $region5: #{policy_net_forward.1} parent=1 // pred_fallthru
      _
    // Predicated region
    $region6: #{policy_net_forward.1} parent=1 // pred_check
      _
    $region7: #{policy_net_forward.1} parent=1 // pred_check_branch
      %26 = sbr.rel (0) target = $region9
    $region8: #{policy_net_forward.1} parent=1 // pred_region
      _
    $region9: #{policy_net_forward.1} parent=1 // pred_fallthru
      _
    // Predicated region
    $region10: #{policy_net_forward.1} parent=1 // pred_check
      _
    $region11: #{policy_net_forward.1} parent=1 // pred_check_branch
      %28 = sbr.rel (0) target = $region13
    $region12: #{policy_net_forward.1} parent=1 // pred_region
      _
    $region13: #{policy_net_forward.1} parent=1 // pred_fallthru
      _
    // Predicated region
    $region14: #{policy_net_forward.1} parent=1 // pred_check
      _
    $region15: #{policy_net_forward.1} parent=1 // pred_check_branch
      %30 = sbr.rel (0) target = $region17
    $region16: #{policy_net_forward.1} parent=1 // pred_region
      _
    $region17: #{policy_net_forward.1} parent=1 // pred_fallthru
      _
    // Predicated region
    $region18: #{policy_net_forward.1} parent=1 // pred_check
      _
    $region19: #{policy_net_forward.1} parent=1 // pred_check_branch
      %32 = sbr.rel (0) target = $region21
    $region20: #{policy_net_forward.1} parent=1 // pred_region
      _
    $region21: #{policy_net_forward.1} parent=1 // pred_fallthru
      _
    // Predicated region
    $region22: #{policy_net_forward.1} parent=1 // pred_check
      _
    $region23: #{policy_net_forward.1} parent=1 // pred_check_branch
      %34 = sbr.rel (0) target = $region25
    $region24: #{policy_net_forward.1} parent=1 // pred_region
      _
    $region25: #{policy_net_forward.1} parent=1 // pred_fallthru
      _
    // Predicated region
    $region26: #{policy_net_forward.1} parent=1 // pred_check
      _
    $region27: #{policy_net_forward.1} parent=1 // pred_check_branch
      %36 = sbr.rel (0) target = $region29
    $region28: #{policy_net_forward.1} parent=1 // pred_region
      _
    $region29: #{policy_net_forward.1} parent=1 // pred_fallthru
      _
    // Predicated region
    $region30: #{policy_net_forward.1} parent=1 // pred_check
      _
    $region31: #{policy_net_forward.1} parent=1 // pred_check_branch
      %38 = sbr.rel (0) target = $region33
    $region32: #{policy_net_forward.1} parent=1 // pred_region
      %s40 = ssub.s32 2048, 2048
      %41 = vsyncadd [#allocation3], %s40
      %s42 = sshll.u32 [#allocation2], 4
      %s43 = int_to_ptr.vmem [resolvable:$true] %s42
      %48 = dma.hbm_to_vmem [thread:$0]  %s7, 2048, %s43, [#allocation3], 128, 128, 8
    $region33: #{policy_net_forward.1} parent=1 // pred_fallthru
      _
    // Predicated region
    $region34: #{policy_net_forward.1} parent=1 // pred_check
      _
    $region35: #{policy_net_forward.1} parent=1 // pred_check_branch
      %50 = sbr.rel (0) target = $region37
    $region36: #{policy_net_forward.1} parent=1 // pred_region
      %s52 = ssub.s32 2048, 2048
      %53 = vsyncadd [#allocation5], %s52
      %s54 = sshll.u32 [#allocation4], 4
      %s55 = int_to_ptr.vmem [resolvable:$true] %s54
      %60 = dma.hbm_to_vmem [thread:$0]  %s8, 2048, %s55, [#allocation5], 128, 128, 8
    $region37: #{policy_net_forward.1} parent=1 // pred_fallthru
      _
    // Predicated region
    $region38: #{policy_net_forward.1} parent=1 // pred_check
      _
    $region39: #{policy_net_forward.1} parent=1 // pred_check_branch
      %62 = sbr.rel (0) target = $region41
    $region40: #{policy_net_forward.1} parent=1 // pred_region
      %s64 = ssub.s32 2048, 2048
      %65 = vsyncadd [#allocation5], %s64
      %s66 = sshll.u32 [#allocation6], 4
      %s67 = int_to_ptr.vmem [resolvable:$true] %s66
      %72 = dma.hbm_to_vmem [thread:$0]  %s9, 2048, %s67, [#allocation5], 128, 128, 8
    $region41: #{policy_net_forward.1} parent=1 // pred_fallthru
      _
    // Predicated region
    $region42: #{policy_net_forward.1} parent=1 // pred_check
      _
    $region43: #{policy_net_forward.1} parent=1 // pred_check_branch
      %74 = sbr.rel (0) target = $region45
    $region44: #{policy_net_forward.1} parent=1 // pred_region
      _
    $region45: #{policy_net_forward.1} parent=1 // pred_fallthru
      _
    // Predicated region
    $region46: #{policy_net_forward.1} parent=1 // pred_check
      _
    $region47: #{policy_net_forward.1} parent=1 // pred_check_branch
      %76 = sbr.rel (0) target = $region49
    $region48: #{policy_net_forward.1} parent=1 // pred_region
      %s78 = ssub.s32 2048, 2048
      %79 = vsyncadd [#allocation8], %s78
      %s80 = sshll.u32 [#allocation7], 4
      %s81 = int_to_ptr.vmem [resolvable:$true] %s80
      %86 = dma.hbm_to_vmem [thread:$0]  %s11, 2048, %s81, [#allocation8], 128, 128, 8
    $region49: #{policy_net_forward.1} parent=1 // pred_fallthru
      _
    // Predicated region
    $region50: #{policy_net_forward.1} parent=1 // pred_check
      _
    $region51: #{policy_net_forward.1} parent=1 // pred_check_branch
      %88 = sbr.rel (0) target = $region53
    $region52: #{policy_net_forward.1} parent=1 // pred_region
      _
    $region53: #{policy_net_forward.1} parent=1 // pred_fallthru
      _
    // Predicated region
    $region54: #{policy_net_forward.1} parent=1 // pred_check
      _
    $region55: #{policy_net_forward.1} parent=1 // pred_check_branch
      %90 = sbr.rel (0) target = $region57
    $region56: #{policy_net_forward.1} parent=1 // pred_region
      %s92 = ssub.s32 2048, 2048
      %93 = vsyncadd [#allocation8], %s92
      %s94 = sshll.u32 [#allocation9], 4
      %s95 = int_to_ptr.vmem [resolvable:$true] %s94
      %100 = dma.hbm_to_vmem [thread:$0]  %s13, 2048, %s95, [#allocation8], 128, 128, 8
    $region57: #{policy_net_forward.1} parent=1 // pred_fallthru
      _
    // Predicated region
    $region58: #{policy_net_forward.1} parent=1 // pred_check
      _
    $region59: #{policy_net_forward.1} parent=1 // pred_check_branch
      %102 = sbr.rel (0) target = $region61
    $region60: #{policy_net_forward.1} parent=1 // pred_region
      _
    $region61: #{policy_net_forward.1} parent=1 // pred_fallthru
      _
    // Predicated region
    $region62: #{policy_net_forward.1} parent=1 // pred_check
      _
    $region63: #{policy_net_forward.1} parent=1 // pred_check_branch
      %104 = sbr.rel (0) target = $region65
    $region64: #{policy_net_forward.1} parent=1 // pred_region
      %105 = dma.done [#allocation3], 2048
    $region65: #{policy_net_forward.1} parent=1 // pred_fallthru
      _
    // Predicated region
    $region66: #{policy_net_forward.1} parent=1 // pred_check
      _
    $region67: #{policy_net_forward.1} parent=1 // pred_check_branch
      %107 = sbr.rel (0) target = $region69
    $region68: #{policy_net_forward.1} parent=1 // pred_region
      %108 = dma.done [#allocation5], 2048
    $region69: #{policy_net_forward.1} parent=1 // pred_fallthru
      _
    // Predicated region
    $region70: #{policy_net_forward.1} parent=1 // pred_check
      _
    $region71: #{policy_net_forward.1} parent=1 // pred_check_branch
      %110 = sbr.rel (0) target = $region73
    $region72: #{policy_net_forward.1} parent=1 // pred_region
      %111 = dma.done [#allocation5], 2048
    $region73: #{policy_net_forward.1} parent=1 // pred_fallthru
      _
    // Predicated region
    $region74: #{policy_net_forward.1} parent=1 // pred_check
      _
    $region75: #{policy_net_forward.1} parent=1 // pred_check_branch
      %113 = sbr.rel (0) target = $region77
    $region76: #{policy_net_forward.1} parent=1 // pred_region
      %114 = dma.done [#allocation8], 2048
    $region77: #{policy_net_forward.1} parent=1 // pred_fallthru
      _
    // Predicated region
    $region78: #{policy_net_forward.1} parent=1 // pred_check
      _
    $region79: #{policy_net_forward.1} parent=1 // pred_check_branch
      %116 = sbr.rel (0) target = $region81
    $region80: #{policy_net_forward.1} parent=1 // pred_region
      %117 = dma.done [#allocation8], 2048
    $region81: #{policy_net_forward.1} parent=1 // pred_fallthru
      _
    %v118 = vld [vmem:[%s0] sm:$0xff]
    %v119 = vld [vmem:[%s0 + $0x8] sm:$0xff]
    %v120 = vld [vmem:[%s0 + $0x10] sm:$0xff]
    %v121 = vld [vmem:[%s2] sm:$0xff]
    %v122 = vld [vmem:[%s2 + $0x8] sm:$0xff]
    %v123 = vld [vmem:[%s2 + $0x10] sm:$0xff]
    %v124 = vld [vmem:[%s2 + $0x18] sm:$0xff]
    %v125 = vld [vmem:[%s2 + $0x20] sm:$0xff]
    %v126 = vld [vmem:[%s2 + $0x28] sm:$0xff]
    %v127 = vld [vmem:[%s2 + $0x30] sm:$0xff]
    %v128 = vld [vmem:[%s2 + $0x38] sm:$0xff]
    %v129 = vld [vmem:[%s2 + $0x40] sm:$0xff]
    %v130 = vld [vmem:[%s2 + $0x48] sm:$0xff]
    %v131 = vld [vmem:[%s2 + $0x50] sm:$0xff]
    %v132 = vld [vmem:[%s2 + $0x58] sm:$0xff]
    %v133 = vld [vmem:[%s2 + $0x60] sm:$0xff]
    %v134 = vld [vmem:[%s2 + $0x68] sm:$0xff]
    %v135 = vld [vmem:[%s2 + $0x70] sm:$0xff]
    %v136 = vld [vmem:[%s2 + $0x78] sm:$0xff]
    %v137 = vld [vmem:[%s3] sm:$0x1]
    %v138 = vlaneseq
    %v139 = vshrl.u32 %v138, 7
    %v140 = vsub.s32 0, %v139
    %v141 = vrot.slane %v137, %v140
    %142 = vmatprep.subr.mxu0 0.0
    %143 = vmatpush1.msra.mxu0 %v136
    %144 = vmatprep.subr.mxu0 0.0
    %145 = vmatpush1.msra.mxu0 %v135
    %146 = vmatprep.subr.mxu0 0.0
    %147 = vmatpush1.msra.mxu0 %v134
    %148 = vmatprep.subr.mxu0 0.0
    %149 = vmatpush1.msra.mxu0 %v133
    %150 = vmatprep.subr.mxu0 0.0
    %151 = vmatpush1.msra.mxu0 %v132
    %152 = vmatprep.subr.mxu0 0.0
    %153 = vmatpush1.msra.mxu0 %v131
    %154 = vmatprep.subr.mxu0 0.0
    %155 = vmatpush1.msra.mxu0 %v130
    %156 = vmatprep.subr.mxu0 0.0
    %157 = vmatpush1.msra.mxu0 %v129
    %158 = vmatprep.subr.mxu0 0.0
    %159 = vmatpush1.msra.mxu0 %v128
    %160 = vmatprep.subr.mxu0 0.0
    %161 = vmatpush1.msra.mxu0 %v127
    %162 = vmatprep.subr.mxu0 0.0
    %163 = vmatpush1.msra.mxu0 %v126
    %164 = vmatprep.subr.mxu0 0.0
    %165 = vmatpush1.msra.mxu0 %v125
    %166 = vmatprep.subr.mxu0 0.0
    %167 = vmatpush1.msra.mxu0 %v124
    %168 = vmatprep.subr.mxu0 0.0
    %169 = vmatpush1.msra.mxu0 %v123
    %170 = vmatprep.subr.mxu0 0.0
    %171 = vmatpush1.msra.mxu0 %v122
    %172 = vmatprep.subr.mxu0 0.0
    %173 = vmatpush1.msra.mxu0 %v121
    %174 = vmatprep.subr.mxu0 0.0
    %175 = vmatpush2.msra.mxu0 0.0
    %176 = vmatprep.subr.mxu0 0.0
    %177 = vmatpush2.msra.mxu0 0.0
    %178 = vmatprep.subr.mxu0 0.0
    %179 = vmatpush2.msra.mxu0 0.0
    %180 = vmatprep.subr.mxu0 0.0
    %181 = vmatpush2.msra.mxu0 0.0
    %182 = vmatprep.subr.mxu0 0.0
    %183 = vmatpush2.msra.mxu0 0.0
    %184 = vmatprep.subr.mxu0 0.0
    %185 = vmatpush2.msra.mxu0 0.0
    %186 = vmatprep.subr.mxu0 0.0
    %187 = vmatpush2.msra.mxu0 0.0
    %188 = vmatprep.subr.mxu0 0.0
    %189 = vmatpush2.msra.mxu0 0.0
    %190 = vmatprep.subr.mxu0 0.0
    %191 = vmatpush2.msra.mxu0 0.0
    %192 = vmatprep.subr.mxu0 0.0
    %193 = vmatpush2.msra.mxu0 0.0
    %194 = vmatprep.subr.mxu0 0.0
    %195 = vmatpush2.msra.mxu0 0.0
    %196 = vmatprep.subr.mxu0 0.0
    %197 = vmatpush2.msra.mxu0 0.0
    %198 = vmatprep.subr.mxu0 0.0
    %199 = vmatpush2.msra.mxu0 0.0
    %200 = vmatprep.subr.mxu0 0.0
    %201 = vmatpush2.msra.mxu0 0.0
    %202 = vmatprep.subr.mxu0 0.0
    %203 = vmatpush2.msra.mxu0 0.0
    %204 = vmatprep.subr.mxu0 0.0
    %205 = vmatpush2.msra.mxu0 0.0
    %206 = vmatprep.mubr.f32.mxu0 0.0
    %207 = vmatmul.mubr.f32.gmra.mxu0 %v118
    %v208 = vpop.f32.mrf.mxu0
    %v209 = vadd.f32 %v141, %v208
    %v210 = vpop.f32.mrf.mxu0
    %211 = vmatprep.mubr.f32.mxu0 0.0
    %212 = vmatmul.mubr.f32.gmra.mxu0 %v119
    %v213 = vpop.f32.mrf.mxu0
    %v214 = vadd.f32 %v141, %v213
    %v215 = vpop.f32.mrf.mxu0
    %216 = vmatprep.mubr.f32.mxu0 0.0
    %217 = vmatmul.mubr.f32.gmra.mxu0 %v120
    %v218 = vpop.f32.mrf.mxu0
    %v219 = vadd.f32 %v141, %v218
    %v220 = vpop.f32.mrf.mxu0
    %221 = vdwg.mxu0
    %v222 = vmax.f32 %v209, 0.0
    %v223 = vmax.f32 %v214, 0.0
    %v224 = vmax.f32 %v219, 0.0
    %v225 = vld [vmem:[%s4] sm:$0xff]
    %v226 = vld [vmem:[%s4 + $0x8] sm:$0xff]
    %v227 = vld [vmem:[%s4 + $0x10] sm:$0xff]
    %v228 = vld [vmem:[%s4 + $0x18] sm:$0xff]
    %v229 = vld [vmem:[%s4 + $0x20] sm:$0xff]
    %v230 = vld [vmem:[%s4 + $0x28] sm:$0xff]
    %v231 = vld [vmem:[%s4 + $0x30] sm:$0xff]
    %v232 = vld [vmem:[%s4 + $0x38] sm:$0xff]
    %v233 = vld [vmem:[%s4 + $0x40] sm:$0xff]
    %v234 = vld [vmem:[%s4 + $0x48] sm:$0xff]
    %v235 = vld [vmem:[%s4 + $0x50] sm:$0xff]
    %v236 = vld [vmem:[%s4 + $0x58] sm:$0xff]
    %v237 = vld [vmem:[%s4 + $0x60] sm:$0xff]
    %v238 = vld [vmem:[%s4 + $0x68] sm:$0xff]
    %v239 = vld [vmem:[%s4 + $0x70] sm:$0xff]
    %v240 = vld [vmem:[%s4 + $0x78] sm:$0xff]
    %v241 = vld [vmem:[%s5] sm:$0x1]
    %v242 = vlaneseq
    %v243 = vshrl.u32 %v242, 7
    %v244 = vsub.s32 0, %v243
    %v245 = vrot.slane %v241, %v244
    %246 = vmatprep.subr.mxu0 0.0
    %247 = vmatpush1.msra.mxu0 %v240
    %248 = vmatprep.subr.mxu0 0.0
    %249 = vmatpush1.msra.mxu0 %v239
    %250 = vmatprep.subr.mxu0 0.0
    %251 = vmatpush1.msra.mxu0 %v238
    %252 = vmatprep.subr.mxu0 0.0
    %253 = vmatpush1.msra.mxu0 %v237
    %254 = vmatprep.subr.mxu0 0.0
    %255 = vmatpush1.msra.mxu0 %v236
    %256 = vmatprep.subr.mxu0 0.0
    %257 = vmatpush1.msra.mxu0 %v235
    %258 = vmatprep.subr.mxu0 0.0
    %259 = vmatpush1.msra.mxu0 %v234
    %260 = vmatprep.subr.mxu0 0.0
    %261 = vmatpush1.msra.mxu0 %v233
    %262 = vmatprep.subr.mxu0 0.0
    %263 = vmatpush1.msra.mxu0 %v232
    %264 = vmatprep.subr.mxu0 0.0
    %265 = vmatpush1.msra.mxu0 %v231
    %266 = vmatprep.subr.mxu0 0.0
    %267 = vmatpush1.msra.mxu0 %v230
    %268 = vmatprep.subr.mxu0 0.0
    %269 = vmatpush1.msra.mxu0 %v229
    %270 = vmatprep.subr.mxu0 0.0
    %271 = vmatpush1.msra.mxu0 %v228
    %272 = vmatprep.subr.mxu0 0.0
    %273 = vmatpush1.msra.mxu0 %v227
    %274 = vmatprep.subr.mxu0 0.0
    %275 = vmatpush1.msra.mxu0 %v226
    %276 = vmatprep.subr.mxu0 0.0
    %277 = vmatpush1.msra.mxu0 %v225
    %278 = vmatprep.subr.mxu0 0.0
    %279 = vmatpush2.msra.mxu0 0.0
    %280 = vmatprep.subr.mxu0 0.0
    %281 = vmatpush2.msra.mxu0 0.0
    %282 = vmatprep.subr.mxu0 0.0
    %283 = vmatpush2.msra.mxu0 0.0
    %284 = vmatprep.subr.mxu0 0.0
    %285 = vmatpush2.msra.mxu0 0.0
    %286 = vmatprep.subr.mxu0 0.0
    %287 = vmatpush2.msra.mxu0 0.0
    %288 = vmatprep.subr.mxu0 0.0
    %289 = vmatpush2.msra.mxu0 0.0
    %290 = vmatprep.subr.mxu0 0.0
    %291 = vmatpush2.msra.mxu0 0.0
    %292 = vmatprep.subr.mxu0 0.0
    %293 = vmatpush2.msra.mxu0 0.0
    %294 = vmatprep.subr.mxu0 0.0
    %295 = vmatpush2.msra.mxu0 0.0
    %296 = vmatprep.subr.mxu0 0.0
    %297 = vmatpush2.msra.mxu0 0.0
    %298 = vmatprep.subr.mxu0 0.0
    %299 = vmatpush2.msra.mxu0 0.0
    %300 = vmatprep.subr.mxu0 0.0
    %301 = vmatpush2.msra.mxu0 0.0
    %302 = vmatprep.subr.mxu0 0.0
    %303 = vmatpush2.msra.mxu0 0.0
    %304 = vmatprep.subr.mxu0 0.0
    %305 = vmatpush2.msra.mxu0 0.0
    %306 = vmatprep.subr.mxu0 0.0
    %307 = vmatpush2.msra.mxu0 0.0
    %308 = vmatprep.subr.mxu0 0.0
    %309 = vmatpush2.msra.mxu0 0.0
    %310 = vmatprep.mubr.f32.mxu0 0.0
    %311 = vmatmul.mubr.f32.gmra.mxu0 %v222
    %v312 = vpop.f32.mrf.mxu0
    %v313 = vadd.f32 %v245, %v312
    %v314 = vpop.f32.mrf.mxu0
    %315 = vmatprep.mubr.f32.mxu0 0.0
    %316 = vmatmul.mubr.f32.gmra.mxu0 %v223
    %v317 = vpop.f32.mrf.mxu0
    %v318 = vadd.f32 %v245, %v317
    %v319 = vpop.f32.mrf.mxu0
    %320 = vmatprep.mubr.f32.mxu0 0.0
    %321 = vmatmul.mubr.f32.gmra.mxu0 %v224
    %v322 = vpop.f32.mrf.mxu0
    %v323 = vadd.f32 %v245, %v322
    %v324 = vpop.f32.mrf.mxu0
    %325 = vdwg.mxu0
    %v326 = vmax.f32 %v313, 0.0
    %v327 = vmax.f32 %v318, 0.0
    %v328 = vmax.f32 %v323, 0.0
    %v329 = vld [vmem:[%s6] sm:$0xff]
    %v330 = vld [vmem:[%s6 + $0x8] sm:$0xff]
    %v331 = vld [vmem:[%s6 + $0x10] sm:$0xff]
    %v332 = vld [vmem:[%s6 + $0x18] sm:$0xff]
    %v333 = vld [vmem:[%s6 + $0x20] sm:$0xff]
    %v334 = vld [vmem:[%s6 + $0x28] sm:$0xff]
    %v335 = vld [vmem:[%s6 + $0x30] sm:$0xff]
    %v336 = vld [vmem:[%s6 + $0x38] sm:$0xff]
    %v337 = vld [vmem:[%s6 + $0x40] sm:$0xff]
    %v338 = vld [vmem:[%s6 + $0x48] sm:$0xff]
    %v339 = vld [vmem:[%s6 + $0x50] sm:$0xff]
    %v340 = vld [vmem:[%s6 + $0x58] sm:$0xff]
    %v341 = vld [vmem:[%s6 + $0x60] sm:$0xff]
    %v342 = vld [vmem:[%s6 + $0x68] sm:$0xff]
    %v343 = vld [vmem:[%s6 + $0x70] sm:$0xff]
    %v344 = vld [vmem:[%s6 + $0x78] sm:$0xff]
    %v345 = vld [vmem:[%s1] sm:$0xff]
    %v346 = vld [vmem:[#allocation2] sm:$0xff]
    %v347 = vld [vmem:[#allocation2 + $0x8] sm:$0xff]
    %v348 = vld [vmem:[#allocation2 + $0x10] sm:$0xff]
    %v349 = vld [vmem:[#allocation2 + $0x18] sm:$0xff]
    %v350 = vld [vmem:[#allocation2 + $0x20] sm:$0xff]
    %v351 = vld [vmem:[#allocation2 + $0x28] sm:$0xff]
    %v352 = vld [vmem:[#allocation2 + $0x30] sm:$0xff]
    %v353 = vld [vmem:[#allocation2 + $0x38] sm:$0xff]
    %v354 = vld [vmem:[#allocation2 + $0x40] sm:$0xff]
    %v355 = vld [vmem:[#allocation2 + $0x48] sm:$0xff]
    %v356 = vld [vmem:[#allocation2 + $0x50] sm:$0xff]
    %v357 = vld [vmem:[#allocation2 + $0x58] sm:$0xff]
    %v358 = vld [vmem:[#allocation2 + $0x60] sm:$0xff]
    %v359 = vld [vmem:[#allocation2 + $0x68] sm:$0xff]
    %v360 = vld [vmem:[#allocation2 + $0x70] sm:$0xff]
    %v361 = vld [vmem:[#allocation2 + $0x78] sm:$0xff]
    %362 = vmatprep.subr.mxu0 0.0
    %363 = vmatpush1.msra.mxu0 %v361
    %364 = vmatprep.subr.mxu0 0.0
    %365 = vmatpush1.msra.mxu0 %v360
    %366 = vmatprep.subr.mxu0 0.0
    %367 = vmatpush1.msra.mxu0 %v359
    %368 = vmatprep.subr.mxu0 0.0
    %369 = vmatpush1.msra.mxu0 %v358
    %370 = vmatprep.subr.mxu0 0.0
    %371 = vmatpush1.msra.mxu0 %v357
    %372 = vmatprep.subr.mxu0 0.0
    %373 = vmatpush1.msra.mxu0 %v356
    %374 = vmatprep.subr.mxu0 0.0
    %375 = vmatpush1.msra.mxu0 %v355
    %376 = vmatprep.subr.mxu0 0.0
    %377 = vmatpush1.msra.mxu0 %v354
    %378 = vmatprep.subr.mxu0 0.0
    %379 = vmatpush1.msra.mxu0 %v353
    %380 = vmatprep.subr.mxu0 0.0
    %381 = vmatpush1.msra.mxu0 %v352
    %382 = vmatprep.subr.mxu0 0.0
    %383 = vmatpush1.msra.mxu0 %v351
    %384 = vmatprep.subr.mxu0 0.0
    %385 = vmatpush1.msra.mxu0 %v350
    %386 = vmatprep.subr.mxu0 0.0
    %387 = vmatpush1.msra.mxu0 %v349
    %388 = vmatprep.subr.mxu0 0.0
    %389 = vmatpush1.msra.mxu0 %v348
    %390 = vmatprep.subr.mxu0 0.0
    %391 = vmatpush1.msra.mxu0 %v347
    %392 = vmatprep.subr.mxu0 0.0
    %393 = vmatpush1.msra.mxu0 %v346
    %394 = vmatprep.subr.mxu0 0.0
    %395 = vmatpush2.msra.mxu0 0.0
    %396 = vmatprep.subr.mxu0 0.0
    %397 = vmatpush2.msra.mxu0 0.0
    %398 = vmatprep.subr.mxu0 0.0
    %399 = vmatpush2.msra.mxu0 0.0
    %400 = vmatprep.subr.mxu0 0.0
    %401 = vmatpush2.msra.mxu0 0.0
    %402 = vmatprep.subr.mxu0 0.0
    %403 = vmatpush2.msra.mxu0 0.0
    %404 = vmatprep.subr.mxu0 0.0
    %405 = vmatpush2.msra.mxu0 0.0
    %406 = vmatprep.subr.mxu0 0.0
    %407 = vmatpush2.msra.mxu0 0.0
    %408 = vmatprep.subr.mxu0 0.0
    %409 = vmatpush2.msra.mxu0 0.0
    %410 = vmatprep.subr.mxu0 0.0
    %411 = vmatpush2.msra.mxu0 0.0
    %412 = vmatprep.subr.mxu0 0.0
    %413 = vmatpush2.msra.mxu0 0.0
    %414 = vmatprep.subr.mxu0 0.0
    %415 = vmatpush2.msra.mxu0 0.0
    %416 = vmatprep.subr.mxu0 0.0
    %417 = vmatpush2.msra.mxu0 0.0
    %418 = vmatprep.subr.mxu0 0.0
    %419 = vmatpush2.msra.mxu0 0.0
    %420 = vmatprep.subr.mxu0 0.0
    %421 = vmatpush2.msra.mxu0 0.0
    %422 = vmatprep.subr.mxu0 0.0
    %423 = vmatpush2.msra.mxu0 0.0
    %424 = vmatprep.subr.mxu0 0.0
    %425 = vmatpush2.msra.mxu0 0.0
    %426 = vmatprep.mubr.f32.mxu0 0.0
    %427 = vmatmul.mubr.f32.gmra.mxu0 %v326
    %v428 = vpop.f32.mrf.mxu0
    %v429 = vadd.f32 0.0, %v428
    %v430 = vpop.f32.mrf.mxu0
    %431 = vdwg.mxu0
    %432 = vmatprep.subr.mxu0 0.0
    %433 = vmatpush1.msra.mxu0 %v344
    %434 = vmatprep.subr.mxu0 0.0
    %435 = vmatpush1.msra.mxu0 %v343
    %436 = vmatprep.subr.mxu0 0.0
    %437 = vmatpush1.msra.mxu0 %v342
    %438 = vmatprep.subr.mxu0 0.0
    %439 = vmatpush1.msra.mxu0 %v341
    %440 = vmatprep.subr.mxu0 0.0
    %441 = vmatpush1.msra.mxu0 %v340
    %442 = vmatprep.subr.mxu0 0.0
    %443 = vmatpush1.msra.mxu0 %v339
    %444 = vmatprep.subr.mxu0 0.0
    %445 = vmatpush1.msra.mxu0 %v338
    %446 = vmatprep.subr.mxu0 0.0
    %447 = vmatpush1.msra.mxu0 %v337
    %448 = vmatprep.subr.mxu0 0.0
    %449 = vmatpush1.msra.mxu0 %v336
    %450 = vmatprep.subr.mxu0 0.0
    %451 = vmatpush1.msra.mxu0 %v335
    %452 = vmatprep.subr.mxu0 0.0
    %453 = vmatpush1.msra.mxu0 %v334
    %454 = vmatprep.subr.mxu0 0.0
    %455 = vmatpush1.msra.mxu0 %v333
    %456 = vmatprep.subr.mxu0 0.0
    %457 = vmatpush1.msra.mxu0 %v332
    %458 = vmatprep.subr.mxu0 0.0
    %459 = vmatpush1.msra.mxu0 %v331
    %460 = vmatprep.subr.mxu0 0.0
    %461 = vmatpush1.msra.mxu0 %v330
    %462 = vmatprep.subr.mxu0 0.0
    %463 = vmatpush1.msra.mxu0 %v329
    %464 = vmatprep.subr.mxu0 0.0
    %465 = vmatpush2.msra.mxu0 0.0
    %466 = vmatprep.subr.mxu0 0.0
    %467 = vmatpush2.msra.mxu0 0.0
    %468 = vmatprep.subr.mxu0 0.0
    %469 = vmatpush2.msra.mxu0 0.0
    %470 = vmatprep.subr.mxu0 0.0
    %471 = vmatpush2.msra.mxu0 0.0
    %472 = vmatprep.subr.mxu0 0.0
    %473 = vmatpush2.msra.mxu0 0.0
    %474 = vmatprep.subr.mxu0 0.0
    %475 = vmatpush2.msra.mxu0 0.0
    %476 = vmatprep.subr.mxu0 0.0
    %477 = vmatpush2.msra.mxu0 0.0
    %478 = vmatprep.subr.mxu0 0.0
    %479 = vmatpush2.msra.mxu0 0.0
    %480 = vmatprep.subr.mxu0 0.0
    %481 = vmatpush2.msra.mxu0 0.0
    %482 = vmatprep.subr.mxu0 0.0
    %483 = vmatpush2.msra.mxu0 0.0
    %484 = vmatprep.subr.mxu0 0.0
    %485 = vmatpush2.msra.mxu0 0.0
    %486 = vmatprep.subr.mxu0 0.0
    %487 = vmatpush2.msra.mxu0 0.0
    %488 = vmatprep.subr.mxu0 0.0
    %489 = vmatpush2.msra.mxu0 0.0
    %490 = vmatprep.subr.mxu0 0.0
    %491 = vmatpush2.msra.mxu0 0.0
    %492 = vmatprep.subr.mxu0 0.0
    %493 = vmatpush2.msra.mxu0 0.0
    %494 = vmatprep.subr.mxu0 0.0
    %495 = vmatpush2.msra.mxu0 0.0
    %496 = vmatprep.mubr.f32.mxu0 0.0
    %497 = vmatmul.mubr.f32.gmra.mxu0 %v345
    %v498 = vpop.f32.mrf.mxu0
    %v499 = vadd.f32 %v429, %v498
    %v500 = vpop.f32.mrf.mxu0
    %501 = vdwg.mxu0
    %v502 = vld [vmem:[#allocation4] sm:$0xff]
    %v503 = vld [vmem:[#allocation4 + $0x8] sm:$0xff]
    %v504 = vld [vmem:[#allocation4 + $0x10] sm:$0xff]
    %v505 = vld [vmem:[#allocation4 + $0x18] sm:$0xff]
    %v506 = vld [vmem:[#allocation4 + $0x20] sm:$0xff]
    %v507 = vld [vmem:[#allocation4 + $0x28] sm:$0xff]
    %v508 = vld [vmem:[#allocation4 + $0x30] sm:$0xff]
    %v509 = vld [vmem:[#allocation4 + $0x38] sm:$0xff]
    %v510 = vld [vmem:[#allocation4 + $0x40] sm:$0xff]
    %v511 = vld [vmem:[#allocation4 + $0x48] sm:$0xff]
    %v512 = vld [vmem:[#allocation4 + $0x50] sm:$0xff]
    %v513 = vld [vmem:[#allocation4 + $0x58] sm:$0xff]
    %v514 = vld [vmem:[#allocation4 + $0x60] sm:$0xff]
    %v515 = vld [vmem:[#allocation4 + $0x68] sm:$0xff]
    %v516 = vld [vmem:[#allocation4 + $0x70] sm:$0xff]
    %v517 = vld [vmem:[#allocation4 + $0x78] sm:$0xff]
    %518 = vmatprep.subr.mxu0 0.0
    %519 = vmatpush1.msra.mxu0 %v517
    %520 = vmatprep.subr.mxu0 0.0
    %521 = vmatpush1.msra.mxu0 %v516
    %522 = vmatprep.subr.mxu0 0.0
    %523 = vmatpush1.msra.mxu0 %v515
    %524 = vmatprep.subr.mxu0 0.0
    %525 = vmatpush1.msra.mxu0 %v514
    %526 = vmatprep.subr.mxu0 0.0
    %527 = vmatpush1.msra.mxu0 %v513
    %528 = vmatprep.subr.mxu0 0.0
    %529 = vmatpush1.msra.mxu0 %v512
    %530 = vmatprep.subr.mxu0 0.0
    %531 = vmatpush1.msra.mxu0 %v511
    %532 = vmatprep.subr.mxu0 0.0
    %533 = vmatpush1.msra.mxu0 %v510
    %534 = vmatprep.subr.mxu0 0.0
    %535 = vmatpush1.msra.mxu0 %v509
    %536 = vmatprep.subr.mxu0 0.0
    %537 = vmatpush1.msra.mxu0 %v508
    %538 = vmatprep.subr.mxu0 0.0
    %539 = vmatpush1.msra.mxu0 %v507
    %540 = vmatprep.subr.mxu0 0.0
    %541 = vmatpush1.msra.mxu0 %v506
    %542 = vmatprep.subr.mxu0 0.0
    %543 = vmatpush1.msra.mxu0 %v505
    %544 = vmatprep.subr.mxu0 0.0
    %545 = vmatpush1.msra.mxu0 %v504
    %546 = vmatprep.subr.mxu0 0.0
    %547 = vmatpush1.msra.mxu0 %v503
    %548 = vmatprep.subr.mxu0 0.0
    %549 = vmatpush1.msra.mxu0 %v502
    %550 = vmatprep.subr.mxu0 0.0
    %551 = vmatpush2.msra.mxu0 0.0
    %552 = vmatprep.subr.mxu0 0.0
    %553 = vmatpush2.msra.mxu0 0.0
    %554 = vmatprep.subr.mxu0 0.0
    %555 = vmatpush2.msra.mxu0 0.0
    %556 = vmatprep.subr.mxu0 0.0
    %557 = vmatpush2.msra.mxu0 0.0
    %558 = vmatprep.subr.mxu0 0.0
    %559 = vmatpush2.msra.mxu0 0.0
    %560 = vmatprep.subr.mxu0 0.0
    %561 = vmatpush2.msra.mxu0 0.0
    %562 = vmatprep.subr.mxu0 0.0
    %563 = vmatpush2.msra.mxu0 0.0
    %564 = vmatprep.subr.mxu0 0.0
    %565 = vmatpush2.msra.mxu0 0.0
    %566 = vmatprep.subr.mxu0 0.0
    %567 = vmatpush2.msra.mxu0 0.0
    %568 = vmatprep.subr.mxu0 0.0
    %569 = vmatpush2.msra.mxu0 0.0
    %570 = vmatprep.subr.mxu0 0.0
    %571 = vmatpush2.msra.mxu0 0.0
    %572 = vmatprep.subr.mxu0 0.0
    %573 = vmatpush2.msra.mxu0 0.0
    %574 = vmatprep.subr.mxu0 0.0
    %575 = vmatpush2.msra.mxu0 0.0
    %576 = vmatprep.subr.mxu0 0.0
    %577 = vmatpush2.msra.mxu0 0.0
    %578 = vmatprep.subr.mxu0 0.0
    %579 = vmatpush2.msra.mxu0 0.0
    %580 = vmatprep.subr.mxu0 0.0
    %581 = vmatpush2.msra.mxu0 0.0
    %582 = vmatprep.mubr.f32.mxu0 0.0
    %583 = vmatmul.mubr.f32.gmra.mxu0 %v327
    %v584 = vpop.f32.mrf.mxu0
    %v585 = vadd.f32 0.0, %v584
    %v586 = vpop.f32.mrf.mxu0
    %587 = vdwg.mxu0
    %v588 = vadd.f32 %v499, %v585
    %v589 = vld [vmem:[#allocation6] sm:$0xff]
    %v590 = vld [vmem:[#allocation6 + $0x8] sm:$0xff]
    %v591 = vld [vmem:[#allocation6 + $0x10] sm:$0xff]
    %v592 = vld [vmem:[#allocation6 + $0x18] sm:$0xff]
    %v593 = vld [vmem:[#allocation6 + $0x20] sm:$0xff]
    %v594 = vld [vmem:[#allocation6 + $0x28] sm:$0xff]
    %v595 = vld [vmem:[#allocation6 + $0x30] sm:$0xff]
    %v596 = vld [vmem:[#allocation6 + $0x38] sm:$0xff]
    %v597 = vld [vmem:[#allocation6 + $0x40] sm:$0xff]
    %v598 = vld [vmem:[#allocation6 + $0x48] sm:$0xff]
    %v599 = vld [vmem:[#allocation6 + $0x50] sm:$0xff]
    %v600 = vld [vmem:[#allocation6 + $0x58] sm:$0xff]
    %v601 = vld [vmem:[#allocation6 + $0x60] sm:$0xff]
    %v602 = vld [vmem:[#allocation6 + $0x68] sm:$0xff]
    %v603 = vld [vmem:[#allocation6 + $0x70] sm:$0xff]
    %v604 = vld [vmem:[#allocation6 + $0x78] sm:$0xff]
    %605 = vmatprep.subr.mxu0 0.0
    %606 = vmatpush1.msra.mxu0 %v604
    %607 = vmatprep.subr.mxu0 0.0
    %608 = vmatpush1.msra.mxu0 %v603
    %609 = vmatprep.subr.mxu0 0.0
    %610 = vmatpush1.msra.mxu0 %v602
    %611 = vmatprep.subr.mxu0 0.0
    %612 = vmatpush1.msra.mxu0 %v601
    %613 = vmatprep.subr.mxu0 0.0
    %614 = vmatpush1.msra.mxu0 %v600
    %615 = vmatprep.subr.mxu0 0.0
    %616 = vmatpush1.msra.mxu0 %v599
    %617 = vmatprep.subr.mxu0 0.0
    %618 = vmatpush1.msra.mxu0 %v598
    %619 = vmatprep.subr.mxu0 0.0
    %620 = vmatpush1.msra.mxu0 %v597
    %621 = vmatprep.subr.mxu0 0.0
    %622 = vmatpush1.msra.mxu0 %v596
    %623 = vmatprep.subr.mxu0 0.0
    %624 = vmatpush1.msra.mxu0 %v595
    %625 = vmatprep.subr.mxu0 0.0
    %626 = vmatpush1.msra.mxu0 %v594
    %627 = vmatprep.subr.mxu0 0.0
    %628 = vmatpush1.msra.mxu0 %v593
    %629 = vmatprep.subr.mxu0 0.0
    %630 = vmatpush1.msra.mxu0 %v592
    %631 = vmatprep.subr.mxu0 0.0
    %632 = vmatpush1.msra.mxu0 %v591
    %633 = vmatprep.subr.mxu0 0.0
    %634 = vmatpush1.msra.mxu0 %v590
    %635 = vmatprep.subr.mxu0 0.0
    %636 = vmatpush1.msra.mxu0 %v589
    %637 = vmatprep.subr.mxu0 0.0
    %638 = vmatpush2.msra.mxu0 0.0
    %639 = vmatprep.subr.mxu0 0.0
    %640 = vmatpush2.msra.mxu0 0.0
    %641 = vmatprep.subr.mxu0 0.0
    %642 = vmatpush2.msra.mxu0 0.0
    %643 = vmatprep.subr.mxu0 0.0
    %644 = vmatpush2.msra.mxu0 0.0
    %645 = vmatprep.subr.mxu0 0.0
    %646 = vmatpush2.msra.mxu0 0.0
    %647 = vmatprep.subr.mxu0 0.0
    %648 = vmatpush2.msra.mxu0 0.0
    %649 = vmatprep.subr.mxu0 0.0
    %650 = vmatpush2.msra.mxu0 0.0
    %651 = vmatprep.subr.mxu0 0.0
    %652 = vmatpush2.msra.mxu0 0.0
    %653 = vmatprep.subr.mxu0 0.0
    %654 = vmatpush2.msra.mxu0 0.0
    %655 = vmatprep.subr.mxu0 0.0
    %656 = vmatpush2.msra.mxu0 0.0
    %657 = vmatprep.subr.mxu0 0.0
    %658 = vmatpush2.msra.mxu0 0.0
    %659 = vmatprep.subr.mxu0 0.0
    %660 = vmatpush2.msra.mxu0 0.0
    %661 = vmatprep.subr.mxu0 0.0
    %662 = vmatpush2.msra.mxu0 0.0
    %663 = vmatprep.subr.mxu0 0.0
    %664 = vmatpush2.msra.mxu0 0.0
    %665 = vmatprep.subr.mxu0 0.0
    %666 = vmatpush2.msra.mxu0 0.0
    %667 = vmatprep.subr.mxu0 0.0
    %668 = vmatpush2.msra.mxu0 0.0
    %669 = vmatprep.mubr.f32.mxu0 0.0
    %670 = vmatmul.mubr.f32.gmra.mxu0 %v328
    %v671 = vpop.f32.mrf.mxu0
    %v672 = vadd.f32 0.0, %v671
    %v673 = vpop.f32.mrf.mxu0
    %674 = vdwg.mxu0
    %v675 = vadd.f32 %v588, %v672
    %v676 = vld [vmem:[%s10] sm:$0x1]
    %v677 = vlaneseq
    %v678 = vshrl.u32 %v677, 7
    %v679 = vsub.s32 0, %v678
    %v680 = vrot.slane %v676, %v679
    %v681 = vadd.f32 %v675, %v680
    %v682 = vmax.f32 %v681, 0.0
    %v683 = vld [vmem:[#allocation7] sm:$0xff]
    %v684 = vld [vmem:[#allocation7 + $0x8] sm:$0xff]
    %v685 = vld [vmem:[#allocation7 + $0x10] sm:$0xff]
    %v686 = vld [vmem:[#allocation7 + $0x18] sm:$0xff]
    %v687 = vld [vmem:[#allocation7 + $0x20] sm:$0xff]
    %v688 = vld [vmem:[#allocation7 + $0x28] sm:$0xff]
    %v689 = vld [vmem:[#allocation7 + $0x30] sm:$0xff]
    %v690 = vld [vmem:[#allocation7 + $0x38] sm:$0xff]
    %v691 = vld [vmem:[#allocation7 + $0x40] sm:$0xff]
    %v692 = vld [vmem:[#allocation7 + $0x48] sm:$0xff]
    %v693 = vld [vmem:[#allocation7 + $0x50] sm:$0xff]
    %v694 = vld [vmem:[#allocation7 + $0x58] sm:$0xff]
    %v695 = vld [vmem:[#allocation7 + $0x60] sm:$0xff]
    %v696 = vld [vmem:[#allocation7 + $0x68] sm:$0xff]
    %v697 = vld [vmem:[#allocation7 + $0x70] sm:$0xff]
    %v698 = vld [vmem:[#allocation7 + $0x78] sm:$0xff]
    %v699 = vld [vmem:[%s12] sm:$0x1]
    %v700 = vlaneseq
    %v701 = vshrl.u32 %v700, 7
    %v702 = vsub.s32 0, %v701
    %v703 = vrot.slane %v699, %v702
    %704 = vmatprep.subr.mxu0 0.0
    %705 = vmatpush1.msra.mxu0 %v698
    %706 = vmatprep.subr.mxu0 0.0
    %707 = vmatpush1.msra.mxu0 %v697
    %708 = vmatprep.subr.mxu0 0.0
    %709 = vmatpush1.msra.mxu0 %v696
    %710 = vmatprep.subr.mxu0 0.0
    %711 = vmatpush1.msra.mxu0 %v695
    %712 = vmatprep.subr.mxu0 0.0
    %713 = vmatpush1.msra.mxu0 %v694
    %714 = vmatprep.subr.mxu0 0.0
    %715 = vmatpush1.msra.mxu0 %v693
    %716 = vmatprep.subr.mxu0 0.0
    %717 = vmatpush1.msra.mxu0 %v692
    %718 = vmatprep.subr.mxu0 0.0
    %719 = vmatpush1.msra.mxu0 %v691
    %720 = vmatprep.subr.mxu0 0.0
    %721 = vmatpush1.msra.mxu0 %v690
    %722 = vmatprep.subr.mxu0 0.0
    %723 = vmatpush1.msra.mxu0 %v689
    %724 = vmatprep.subr.mxu0 0.0
    %725 = vmatpush1.msra.mxu0 %v688
    %726 = vmatprep.subr.mxu0 0.0
    %727 = vmatpush1.msra.mxu0 %v687
    %728 = vmatprep.subr.mxu0 0.0
    %729 = vmatpush1.msra.mxu0 %v686
    %730 = vmatprep.subr.mxu0 0.0
    %731 = vmatpush1.msra.mxu0 %v685
    %732 = vmatprep.subr.mxu0 0.0
    %733 = vmatpush1.msra.mxu0 %v684
    %734 = vmatprep.subr.mxu0 0.0
    %735 = vmatpush1.msra.mxu0 %v683
    %736 = vmatprep.subr.mxu0 0.0
    %737 = vmatpush2.msra.mxu0 0.0
    %738 = vmatprep.subr.mxu0 0.0
    %739 = vmatpush2.msra.mxu0 0.0
    %740 = vmatprep.subr.mxu0 0.0
    %741 = vmatpush2.msra.mxu0 0.0
    %742 = vmatprep.subr.mxu0 0.0
    %743 = vmatpush2.msra.mxu0 0.0
    %744 = vmatprep.subr.mxu0 0.0
    %745 = vmatpush2.msra.mxu0 0.0
    %746 = vmatprep.subr.mxu0 0.0
    %747 = vmatpush2.msra.mxu0 0.0
    %748 = vmatprep.subr.mxu0 0.0
    %749 = vmatpush2.msra.mxu0 0.0
    %750 = vmatprep.subr.mxu0 0.0
    %751 = vmatpush2.msra.mxu0 0.0
    %752 = vmatprep.subr.mxu0 0.0
    %753 = vmatpush2.msra.mxu0 0.0
    %754 = vmatprep.subr.mxu0 0.0
    %755 = vmatpush2.msra.mxu0 0.0
    %756 = vmatprep.subr.mxu0 0.0
    %757 = vmatpush2.msra.mxu0 0.0
    %758 = vmatprep.subr.mxu0 0.0
    %759 = vmatpush2.msra.mxu0 0.0
    %760 = vmatprep.subr.mxu0 0.0
    %761 = vmatpush2.msra.mxu0 0.0
    %762 = vmatprep.subr.mxu0 0.0
    %763 = vmatpush2.msra.mxu0 0.0
    %764 = vmatprep.subr.mxu0 0.0
    %765 = vmatpush2.msra.mxu0 0.0
    %766 = vmatprep.subr.mxu0 0.0
    %767 = vmatpush2.msra.mxu0 0.0
    %768 = vmatprep.mubr.f32.mxu0 0.0
    %769 = vmatmul.mubr.f32.gmra.mxu0 %v682
    %v770 = vpop.f32.mrf.mxu0
    %v771 = vadd.f32 %v703, %v770
    %v772 = vpop.f32.mrf.mxu0
    %773 = vdwg.mxu0
    %v774 = vmax.f32 %v771, 0.0
    %v775 = vld [vmem:[#allocation9] sm:$0xff]
    %v776 = vld [vmem:[#allocation9 + $0x8] sm:$0xff]
    %v777 = vld [vmem:[#allocation9 + $0x10] sm:$0xff]
    %v778 = vld [vmem:[#allocation9 + $0x18] sm:$0xff]
    %v779 = vld [vmem:[#allocation9 + $0x20] sm:$0xff]
    %v780 = vld [vmem:[#allocation9 + $0x28] sm:$0xff]
    %v781 = vld [vmem:[#allocation9 + $0x30] sm:$0xff]
    %v782 = vld [vmem:[#allocation9 + $0x38] sm:$0xff]
    %v783 = vld [vmem:[#allocation9 + $0x40] sm:$0xff]
    %v784 = vld [vmem:[#allocation9 + $0x48] sm:$0xff]
    %v785 = vld [vmem:[#allocation9 + $0x50] sm:$0xff]
    %v786 = vld [vmem:[#allocation9 + $0x58] sm:$0xff]
    %v787 = vld [vmem:[#allocation9 + $0x60] sm:$0xff]
    %v788 = vld [vmem:[#allocation9 + $0x68] sm:$0xff]
    %v789 = vld [vmem:[#allocation9 + $0x70] sm:$0xff]
    %v790 = vld [vmem:[#allocation9 + $0x78] sm:$0xff]
    %v791 = vld [vmem:[%s14] sm:$0x1]
    %v792 = vlaneseq
    %v793 = vshrl.u32 %v792, 7
    %v794 = vsub.s32 0, %v793
    %v795 = vrot.slane %v791, %v794
    %796 = vmatprep.subr.mxu0 0.0
    %797 = vmatpush1.msra.mxu0 %v790
    %798 = vmatprep.subr.mxu0 0.0
    %799 = vmatpush1.msra.mxu0 %v789
    %800 = vmatprep.subr.mxu0 0.0
    %801 = vmatpush1.msra.mxu0 %v788
    %802 = vmatprep.subr.mxu0 0.0
    %803 = vmatpush1.msra.mxu0 %v787
    %804 = vmatprep.subr.mxu0 0.0
    %805 = vmatpush1.msra.mxu0 %v786
    %806 = vmatprep.subr.mxu0 0.0
    %807 = vmatpush1.msra.mxu0 %v785
    %808 = vmatprep.subr.mxu0 0.0
    %809 = vmatpush1.msra.mxu0 %v784
    %810 = vmatprep.subr.mxu0 0.0
    %811 = vmatpush1.msra.mxu0 %v783
    %812 = vmatprep.subr.mxu0 0.0
    %813 = vmatpush1.msra.mxu0 %v782
    %814 = vmatprep.subr.mxu0 0.0
    %815 = vmatpush1.msra.mxu0 %v781
    %816 = vmatprep.subr.mxu0 0.0
    %817 = vmatpush1.msra.mxu0 %v780
    %818 = vmatprep.subr.mxu0 0.0
    %819 = vmatpush1.msra.mxu0 %v779
    %820 = vmatprep.subr.mxu0 0.0
    %821 = vmatpush1.msra.mxu0 %v778
    %822 = vmatprep.subr.mxu0 0.0
    %823 = vmatpush1.msra.mxu0 %v777
    %824 = vmatprep.subr.mxu0 0.0
    %825 = vmatpush1.msra.mxu0 %v776
    %826 = vmatprep.subr.mxu0 0.0
    %827 = vmatpush1.msra.mxu0 %v775
    %828 = vmatprep.subr.mxu0 0.0
    %829 = vmatpush2.msra.mxu0 0.0
    %830 = vmatprep.subr.mxu0 0.0
    %831 = vmatpush2.msra.mxu0 0.0
    %832 = vmatprep.subr.mxu0 0.0
    %833 = vmatpush2.msra.mxu0 0.0
    %834 = vmatprep.subr.mxu0 0.0
    %835 = vmatpush2.msra.mxu0 0.0
    %836 = vmatprep.subr.mxu0 0.0
    %837 = vmatpush2.msra.mxu0 0.0
    %838 = vmatprep.subr.mxu0 0.0
    %839 = vmatpush2.msra.mxu0 0.0
    %840 = vmatprep.subr.mxu0 0.0
    %841 = vmatpush2.msra.mxu0 0.0
    %842 = vmatprep.subr.mxu0 0.0
    %843 = vmatpush2.msra.mxu0 0.0
    %844 = vmatprep.subr.mxu0 0.0
    %845 = vmatpush2.msra.mxu0 0.0
    %846 = vmatprep.subr.mxu0 0.0
    %847 = vmatpush2.msra.mxu0 0.0
    %848 = vmatprep.subr.mxu0 0.0
    %849 = vmatpush2.msra.mxu0 0.0
    %850 = vmatprep.subr.mxu0 0.0
    %851 = vmatpush2.msra.mxu0 0.0
    %852 = vmatprep.subr.mxu0 0.0
    %853 = vmatpush2.msra.mxu0 0.0
    %854 = vmatprep.subr.mxu0 0.0
    %855 = vmatpush2.msra.mxu0 0.0
    %856 = vmatprep.subr.mxu0 0.0
    %857 = vmatpush2.msra.mxu0 0.0
    %858 = vmatprep.subr.mxu0 0.0
    %859 = vmatpush2.msra.mxu0 0.0
    %860 = vmatprep.mubr.f32.mxu0 0.0
    %861 = vmatmul.mubr.f32.gmra.mxu0 %v774
    %v862 = vpop.f32.mrf.mxu0
    %v863 = vadd.f32 %v795, %v862
    %v864 = vpop.f32.mrf.mxu0
    %865 = vdwg.mxu0
    %866 = vst [vmem:[%s15] sm:$0xff] %v863
    // Predicated region
    $region82: #{policy_net_forward.1} parent=1 // pred_check
      _
    $region83: #{policy_net_forward.1} parent=1 // pred_check_branch
      %868 = sbr.rel (0) target = $region85
    $region84: #{policy_net_forward.1} parent=1 // pred_region
      _
    $region85: #{policy_net_forward.1} parent=1 // pred_fallthru
      _
    // Predicated region
    $region86: #{policy_net_forward.1} parent=1 // pred_check
      _
    $region87: #{policy_net_forward.1} parent=1 // pred_check_branch
      %870 = sbr.rel (0) target = $region89
    $region88: #{policy_net_forward.1} parent=1 // pred_region
      _
    $region89: #{policy_net_forward.1} parent=1 // pred_fallthru
      _
    %871 = vsyncpa [#allocation3], 1
    %872 = vsyncpa [#allocation5], 1
    %873 = vsyncpa [#allocation8], 1

</llo_original>
